<compile_context>
chip_gen: v7x
topology: tpu7x:2x2x1
jax: 0.10.0
libtpu: 0.0.40
codegen_flags: <defaults>
</compile_context>

<pallas_src>
import functools

import jax
import jax.numpy as jnp
from jax.experimental import pallas as pl
from jax.experimental.pallas import tpu as pltpu

_MAX_TILE_HW = 8192            # max pixels per grid step
_VMEM_INPUT_BUDGET = 8 << 20   # bytes for double-buffered logits blocks (fits v5e/v7x)
_LANES = 128


def _pick_tile_hw(hw, max_c, n_heads):
    """Largest pixel tile (multiple of 128, or the full pixel row) within budget."""
    budget_elems = _VMEM_INPUT_BUDGET // (4 * 2 * max(n_heads, 1))  # f32, double-buffered
    tile = min(_MAX_TILE_HW, max(budget_elems // max(max_c, 1), _LANES))
    tile = max((tile // _LANES) * _LANES, _LANES)
    if hw <= tile:
        return hw  # block == full pixel row: always a legal block shape
    return tile


def _auxce_kernel(t_ref, *refs, n_heads, ignore_index, hw, tile_hw, ragged):
    """One grid step = one (image, pixel-tile) pair for all heads.

    Writes a (1, 1, 128) vector of partial sums:
      lane h (h < n_heads): sum of masked CE loss of head h over this tile
      lane n_heads        : number of non-ignored pixels in this tile
    """
    logit_refs = refs[:n_heads]
    out_ref = refs[n_heads]

    t = t_ref[...]                                        # (1, tile_hw) int32
    valid = t != ignore_index
    if ragged:
        pix = (pl.program_id(1) * tile_hw
               + jax.lax.broadcasted_iota(jnp.int32, (1, tile_hw), 1))
        valid = jnp.logical_and(valid, pix < hw)          # mask out-of-bounds lanes

    lane = jax.lax.broadcasted_iota(jnp.int32, (1, 1, _LANES), 2)
    vec = jnp.where(lane == n_heads,
                    jnp.sum(valid.astype(jnp.float32)),
                    jnp.zeros((1, 1, _LANES), jnp.float32))

    for h, x_ref in enumerate(logit_refs):
        c = x_ref.shape[0]
        x = x_ref[...].astype(jnp.float32)                # (C, tile_hw), classes on sublanes
        m = jnp.max(x, axis=0, keepdims=True)             # (1, tile_hw)
        # TODO(synk): on v6e/v7x a bf16 exp (bf16 EUP) would roughly halve the
        # transcendental cost for large C; kept f32 so the same kernel is exact on v5e.
        lse = m + jnp.log(jnp.sum(jnp.exp(x - m), axis=0, keepdims=True))
        cls = jax.lax.broadcasted_iota(jnp.int32, (c, tile_hw), 0)
        tgt = jnp.sum(jnp.where(cls == t, x, 0.0), axis=0, keepdims=True)
        loss = jnp.where(valid, lse - tgt, 0.0)           # (1, tile_hw)
        vec = jnp.where(lane == h, jnp.sum(loss), vec)

    out_ref[...] = vec


def _ce_mean_losses(logits_list, target_nhw, ignore_index=-100):
    """Per-head F.cross_entropy(..., ignore_index, reduction='mean'), one fused call."""
    n_heads = len(logits_list)
    N, H, W = target_nhw.shape
    HW = H * W
    cs = [int(x.shape[1]) for x in logits_list]
    for x in logits_list:
        assert x.shape[0] == N and x.shape[2] == H and x.shape[3] == W

    tile_hw = _pick_tile_hw(HW, max(cs), n_heads)
    T = pl.cdiv(HW, tile_hw)
    G = N * T
    ragged = (T * tile_hw != HW)

    # Free, view-like reshapes (no transpose / no full-slab pad):
    t3 = target_nhw.reshape(N, 1, HW).astype(jnp.int32)
    xs = [x.reshape(N, c, HW) for x, c in zip(logits_list, cs)]

    kernel = functools.partial(
        _auxce_kernel, n_heads=n_heads, ignore_index=ignore_index,
        hw=HW, tile_hw=tile_hw, ragged=ragged)

    in_specs = [pl.BlockSpec((pl.Squeezed(), 1, tile_hw), lambda n, t: (n, 0, t))]
    in_specs += [pl.BlockSpec((pl.Squeezed(), c, tile_hw), lambda n, t: (n, 0, t))
                 for c in cs]

    partials = pl.pallas_call(
        kernel,
        out_shape=jax.ShapeDtypeStruct((G, 1, _LANES), jnp.float32),
        grid_spec=pltpu.PrefetchScalarGridSpec(
            num_scalar_prefetch=0,
            grid=(N, T),
            in_specs=in_specs,
            out_specs=pl.BlockSpec((1, 1, _LANES),
                                   lambda n, t, T=T: (n * T + t, 0, 0)),
        ),
        compiler_params=pltpu.CompilerParams(
            dimension_semantics=("parallel", "parallel")),
    )(t3, *xs)

    sums = jnp.sum(partials[:, 0, :], axis=0)             # (128,) f32
    count = sums[n_heads]
    return [sums[h] / count for h in range(n_heads)]


def aux_ce_loss(pred, target, loss_weight=1.0, aux_loss_weight=0.5,
                ignore_index=-100):
    """JAX/Pallas equivalent of AUXCELoss.forward.

    pred: dict with key 'out' (and optionally 'aux'), each [N, C, H, W] logits.
    target: [N, H, W] int class indices (ignore_index marks ignored pixels).
    """
    names = list(pred.keys())
    per_head = _ce_mean_losses([pred[k] for k in names], target,
                               ignore_index=ignore_index)
    losses = dict(zip(names, per_head))
    if len(losses) == 1:
        return loss_weight * losses["out"]
    return loss_weight * (losses["out"] + aux_loss_weight * losses["aux"])


def _ref_ce(x, t, ignore):
    """Pure-JAX reference (same semantics as F.cross_entropy mean + ignore_index)."""
    xt = jnp.transpose(x, (0, 2, 3, 1)).astype(jnp.float32)
    lse = jax.scipy.special.logsumexp(xt, axis=-1)
    valid = t != ignore
    ts = jnp.where(valid, t, 0)
    tgt = jnp.take_along_axis(xt, ts[..., None], axis=-1)[..., 0]
    per = jnp.where(valid, lse - tgt, 0.0)
    return per.sum() / valid.sum()


if __name__ == "__main__":
    key = jax.random.PRNGKey(0)

    # --- Case 1: small spatial size (single pixel tile per image) ---
    k1, k2, k3, k4, key = jax.random.split(key, 5)
    N, C, H, W = 2, 4, 16, 16
    out_logits = jax.random.normal(k1, (N, C, H, W), dtype=jnp.float32)
    aux_logits = jax.random.normal(k2, (N, C, H, W), dtype=jnp.float32)
    target = jax.random.randint(k3, (N, H, W), 0, C, dtype=jnp.int32)
    ignore_mask = jax.random.uniform(k4, (N, H, W)) < 0.1
    target = jnp.where(ignore_mask, jnp.int32(-100), target)

    pred = {"out": out_logits, "aux": aux_logits}
    loss = aux_ce_loss(pred, target, loss_weight=1.0, aux_loss_weight=0.5,
                       ignore_index=-100)
    loss = jax.block_until_ready(loss)
    ref = 1.0 * (_ref_ce(out_logits, target, -100)
                 + 0.5 * _ref_ce(aux_logits, target, -100))
    assert jnp.allclose(loss, ref, rtol=1e-4, atol=1e-5), (loss, ref)

    # --- Case 2: spatial size that needs multiple pixel tiles + a ragged tail ---
    k1, k2, k3, k4, key = jax.random.split(key, 5)
    N2, C2, H2, W2 = 2, 4, 96, 96          # H*W = 9216 > 8192 -> 2 tiles, ragged last
    out_logits2 = jax.random.normal(k1, (N2, C2, H2, W2), dtype=jnp.float32)
    aux_logits2 = jax.random.normal(k2, (N2, C2, H2, W2), dtype=jnp.float32)
    target2 = jax.random.randint(k3, (N2, H2, W2), 0, C2, dtype=jnp.int32)
    ignore_mask2 = jax.random.uniform(k4, (N2, H2, W2)) < 0.1
    target2 = jnp.where(ignore_mask2, jnp.int32(-100), target2)

    pred2 = {"out": out_logits2, "aux": aux_logits2}
    loss2 = aux_ce_loss(pred2, target2, loss_weight=1.0, aux_loss_weight=0.5,
                        ignore_index=-100)
    loss2 = jax.block_until_ready(loss2)
    ref2 = 1.0 * (_ref_ce(out_logits2, target2, -100)
                  + 0.5 * _ref_ce(aux_logits2, target2, -100))
    assert jnp.allclose(loss2, ref2, rtol=1e-4, atol=1e-5), (loss2, ref2)

    print("KERNEL_OK")
</pallas_src>

<mosaic_0001>
module attributes {stable_mosaic.version = 11 : i64} {
  func.func @_auxce_kernel(%arg0: i32, %arg1: i32, %arg2: memref<1x1x256xi32, #tpu.memory_space<vmem>>, %arg3: memref<1x4x256xf32, #tpu.memory_space<vmem>>, %arg4: memref<1x4x256xf32, #tpu.memory_space<vmem>>, %arg5: memref<1x1x128xf32, #tpu.memory_space<vmem>>) attributes {dimension_semantics = [#tpu.dimension_semantics<parallel>, #tpu.dimension_semantics<parallel>], iteration_bounds = array<i64: 2, 1>, scalar_prefetch = 0 : i64, scratch_operands = 0 : i64, tpu.core_type = #tpu.core_type<tc>, window_params = [{transform_indices = @transform_0, window_bounds = array<i64: 1, 1, 256>}, {transform_indices = @transform_1, window_bounds = array<i64: 1, 4, 256>}, {transform_indices = @transform_2, window_bounds = array<i64: 1, 4, 256>}, {transform_indices = @transform_3, window_bounds = array<i64: 1, 1, 128>}]} {
    %c0 = arith.constant 0 : index
    %c0_0 = arith.constant 0 : index
    %c0_1 = arith.constant 0 : index
    %0 = vector.load %arg2[%c0, %c0_0, %c0_1] : memref<1x1x256xi32, #tpu.memory_space<vmem>>, vector<1x1x256xi32>
    %1 = vector.shape_cast %0 : vector<1x1x256xi32> to vector<1x256xi32>
    %c-100_i32 = arith.constant -100 : i32
    %2 = vector.broadcast %c-100_i32 : i32 to vector<1x256xi32>
    %3 = arith.cmpi ne, %1, %2 : vector<1x256xi32>
    %4 = tpu.iota {dimensions = array<i32: 2>} : vector<1x1x128xi32>
    %c2_i32 = arith.constant 2 : i32
    %5 = vector.broadcast %c2_i32 : i32 to vector<1x1x128xi32>
    %6 = arith.cmpi eq, %4, %5 : vector<1x1x128xi32>
    %7 = arith.extui %3 : vector<1x256xi1> to vector<1x256xi32>
    %8 = arith.sitofp %7 : vector<1x256xi32> to vector<1x256xf32>
    %9 = vector.shape_cast %8 : vector<1x256xf32> to vector<1x1x256xf32>
    %cst = arith.constant dense<0.000000e+00> : vector<1xf32>
    %10 = vector.multi_reduction <add>, %9, %cst [1, 2] : vector<1x1x256xf32> to vector<1xf32>
    %11 = vector.shape_cast %10 : vector<1xf32> to vector<1x1x1xf32>
    %12 = vector.extract %11[0, 0, 0] : f32 from vector<1x1x1xf32>
    %cst_2 = arith.constant 0.000000e+00 : f32
    %13 = vector.broadcast %cst_2 : f32 to vector<1x1x128xf32>
    %14 = vector.broadcast %12 : f32 to vector<1x1x128xf32>
    %15 = arith.select %6, %14, %13 : vector<1x1x128xi1>, vector<1x1x128xf32>
    %c0_3 = arith.constant 0 : index
    %c0_4 = arith.constant 0 : index
    %c0_5 = arith.constant 0 : index
    %16 = vector.load %arg3[%c0_3, %c0_4, %c0_5] : memref<1x4x256xf32, #tpu.memory_space<vmem>>, vector<1x4x256xf32>
    %17 = vector.shape_cast %16 : vector<1x4x256xf32> to vector<4x256xf32>
    %cst_6 = arith.constant dense<0xFF800000> : vector<256xf32>
    %18 = vector.multi_reduction <maximumf>, %17, %cst_6 [0] : vector<4x256xf32> to vector<256xf32>
    %19 = vector.shape_cast %18 : vector<256xf32> to vector<1x256xf32>
    %20 = vector.broadcast %19 : vector<1x256xf32> to vector<4x256xf32>
    %21 = arith.subf %17, %20 : vector<4x256xf32>
    %22 = math.exp %21 : vector<4x256xf32>
    %cst_7 = arith.constant dense<0.000000e+00> : vector<256xf32>
    %23 = vector.multi_reduction <add>, %22, %cst_7 [0] : vector<4x256xf32> to vector<256xf32>
    %24 = vector.shape_cast %23 : vector<256xf32> to vector<1x256xf32>
    %25 = math.log %24 : vector<1x256xf32>
    %26 = arith.addf %19, %25 : vector<1x256xf32>
    %27 = tpu.iota {dimensions = array<i32: 0>} : vector<4x256xi32>
    %28 = vector.broadcast %1 : vector<1x256xi32> to vector<4x256xi32>
    %29 = arith.cmpi eq, %27, %28 : vector<4x256xi32>
    %cst_8 = arith.constant 0.000000e+00 : f32
    %30 = vector.broadcast %cst_8 : f32 to vector<4x256xf32>
    %31 = arith.select %29, %17, %30 : vector<4x256xi1>, vector<4x256xf32>
    %cst_9 = arith.constant dense<0.000000e+00> : vector<256xf32>
    %32 = vector.multi_reduction <add>, %31, %cst_9 [0] : vector<4x256xf32> to vector<256xf32>
    %33 = vector.shape_cast %32 : vector<256xf32> to vector<1x256xf32>
    %34 = arith.subf %26, %33 : vector<1x256xf32>
    %cst_10 = arith.constant 0.000000e+00 : f32
    %35 = vector.broadcast %cst_10 : f32 to vector<1x256xf32>
    %36 = arith.select %3, %34, %35 : vector<1x256xi1>, vector<1x256xf32>
    %c0_i32 = arith.constant 0 : i32
    %37 = vector.broadcast %c0_i32 : i32 to vector<1x1x128xi32>
    %38 = arith.cmpi eq, %4, %37 : vector<1x1x128xi32>
    %39 = vector.shape_cast %36 : vector<1x256xf32> to vector<1x1x256xf32>
    %cst_11 = arith.constant dense<0.000000e+00> : vector<1xf32>
    %40 = vector.multi_reduction <add>, %39, %cst_11 [1, 2] : vector<1x1x256xf32> to vector<1xf32>
    %41 = vector.shape_cast %40 : vector<1xf32> to vector<1x1x1xf32>
    %42 = vector.extract %41[0, 0, 0] : f32 from vector<1x1x1xf32>
    %43 = vector.broadcast %42 : f32 to vector<1x1x128xf32>
    %44 = arith.select %38, %43, %15 : vector<1x1x128xi1>, vector<1x1x128xf32>
    %c0_12 = arith.constant 0 : index
    %c0_13 = arith.constant 0 : index
    %c0_14 = arith.constant 0 : index
    %45 = vector.load %arg4[%c0_12, %c0_13, %c0_14] : memref<1x4x256xf32, #tpu.memory_space<vmem>>, vector<1x4x256xf32>
    %46 = vector.shape_cast %45 : vector<1x4x256xf32> to vector<4x256xf32>
    %cst_15 = arith.constant dense<0xFF800000> : vector<256xf32>
    %47 = vector.multi_reduction <maximumf>, %46, %cst_15 [0] : vector<4x256xf32> to vector<256xf32>
    %48 = vector.shape_cast %47 : vector<256xf32> to vector<1x256xf32>
    %49 = vector.broadcast %48 : vector<1x256xf32> to vector<4x256xf32>
    %50 = arith.subf %46, %49 : vector<4x256xf32>
    %51 = math.exp %50 : vector<4x256xf32>
    %cst_16 = arith.constant dense<0.000000e+00> : vector<256xf32>
    %52 = vector.multi_reduction <add>, %51, %cst_16 [0] : vector<4x256xf32> to vector<256xf32>
    %53 = vector.shape_cast %52 : vector<256xf32> to vector<1x256xf32>
    %54 = math.log %53 : vector<1x256xf32>
    %55 = arith.addf %48, %54 : vector<1x256xf32>
    %56 = tpu.iota {dimensions = array<i32: 0>} : vector<4x256xi32>
    %57 = vector.broadcast %1 : vector<1x256xi32> to vector<4x256xi32>
    %58 = arith.cmpi eq, %56, %57 : vector<4x256xi32>
    %cst_17 = arith.constant 0.000000e+00 : f32
    %59 = vector.broadcast %cst_17 : f32 to vector<4x256xf32>
    %60 = arith.select %58, %46, %59 : vector<4x256xi1>, vector<4x256xf32>
    %cst_18 = arith.constant dense<0.000000e+00> : vector<256xf32>
    %61 = vector.multi_reduction <add>, %60, %cst_18 [0] : vector<4x256xf32> to vector<256xf32>
    %62 = vector.shape_cast %61 : vector<256xf32> to vector<1x256xf32>
    %63 = arith.subf %55, %62 : vector<1x256xf32>
    %cst_19 = arith.constant 0.000000e+00 : f32
    %64 = vector.broadcast %cst_19 : f32 to vector<1x256xf32>
    %65 = arith.select %3, %63, %64 : vector<1x256xi1>, vector<1x256xf32>
    %c1_i32 = arith.constant 1 : i32
    %66 = vector.broadcast %c1_i32 : i32 to vector<1x1x128xi32>
    %67 = arith.cmpi eq, %4, %66 : vector<1x1x128xi32>
    %68 = vector.shape_cast %65 : vector<1x256xf32> to vector<1x1x256xf32>
    %cst_20 = arith.constant dense<0.000000e+00> : vector<1xf32>
    %69 = vector.multi_reduction <add>, %68, %cst_20 [1, 2] : vector<1x1x256xf32> to vector<1xf32>
    %70 = vector.shape_cast %69 : vector<1xf32> to vector<1x1x1xf32>
    %71 = vector.extract %70[0, 0, 0] : f32 from vector<1x1x1xf32>
    %72 = vector.broadcast %71 : f32 to vector<1x1x128xf32>
    %73 = arith.select %67, %72, %44 : vector<1x1x128xi1>, vector<1x1x128xf32>
    %c0_21 = arith.constant 0 : index
    %c0_22 = arith.constant 0 : index
    %c0_23 = arith.constant 0 : index
    %74 = vector.load %arg5[%c0_21, %c0_22, %c0_23] : memref<1x1x128xf32, #tpu.memory_space<vmem>>, vector<1x1x128xf32>
    tpu.vector_store %arg5[%c0_21, %c0_22, %c0_23], %73 {strides = array<i32>} : memref<1x1x128xf32, #tpu.memory_space<vmem>>, vector<1x1x128xf32>,
    return
  }
  func.func @transform_0(%arg0: i32, %arg1: i32) -> (i32, i32, i32) {
    %c0_i32 = arith.constant 0 : i32
    %c0_i32_0 = arith.constant 0 : i32
    return %arg0, %c0_i32, %arg1 : i32, i32, i32
  }
  func.func @transform_1(%arg0: i32, %arg1: i32) -> (i32, i32, i32) {
    %c0_i32 = arith.constant 0 : i32
    %c0_i32_0 = arith.constant 0 : i32
    return %arg0, %c0_i32, %arg1 : i32, i32, i32
  }
  func.func @transform_2(%arg0: i32, %arg1: i32) -> (i32, i32, i32) {
    %c0_i32 = arith.constant 0 : i32
    %c0_i32_0 = arith.constant 0 : i32
    return %arg0, %c0_i32, %arg1 : i32, i32, i32
  }
  func.func @transform_3(%arg0: i32, %arg1: i32) -> (i32, i32, i32) {
    %c1_i32 = arith.constant 1 : i32
    %0 = arith.muli %arg0, %c1_i32 : i32
    %1 = arith.addi %0, %arg1 : i32
    %c0_i32 = arith.constant 0 : i32
    %c0_i32_0 = arith.constant 0 : i32
    %c0_i32_1 = arith.constant 0 : i32
    return %1, %c0_i32, %c0_i32_0 : i32, i32, i32
  }
}

</mosaic_0001>

<llo_original>
// kernel: tpu_custom_call.1
$region0: #{tpu_custom_call.1}
  #allocation0 [shape = 'u32[]', space=smem, size = 0x4, offset = 0x4, fixed_abs, tag = 'smem constant byte address 0x4 - core index']
  #allocation1 [shape = 'u32[144,128]{1,0:T(1,128)}', space=vmem, size = 0x12000, scoped, tag = 'internal scratch']
  %s0 = inlined_call_operand.hbm [shape: s32[2,1,256], index: 0, kind: input, shape index: {}]
  %s1 = inlined_call_operand.hbm [shape: f32[2,4,256], index: 1, kind: input, shape index: {}]
  %s2 = inlined_call_operand.hbm [shape: f32[2,4,256], index: 2, kind: input, shape index: {}]
  %s3 = inlined_call_operand.hbm [shape: f32[2,1,128], index: 3, kind: output, shape index: {}]
  %s4 = sld [smem:[#allocation0]]
  $region57: #{tpu_custom_call.1} parent=0
    _
  %s6 = ssub.s32 1, %s4
  %s7 = scalar_select 0, %s6, %s4
  $region1: #{tpu_custom_call.1} parent=0
    #allocation2 [shape = 'u8[2048]{0}', space=vmem, size = 0x800, scoped, tag = 'input window, operand 0']
    #allocation3 [shape = 's32[2]{0}', space=sflag, size = 0x8, scoped, tag = 'scoped memory for tpu_custom_call.1']
    #allocation4 [shape = 's32[2]{0}', space=sflag, size = 0x8, scoped, tag = 'scoped memory for tpu_custom_call.1']
    #allocation5 [shape = 'u8[8192]{0}', space=vmem, size = 0x2000, scoped, tag = 'input window, operand 1']
    #allocation6 [shape = 's32[2]{0}', space=sflag, size = 0x8, scoped, tag = 'scoped memory for tpu_custom_call.1']
    #allocation7 [shape = 'u8[8192]{0}', space=vmem, size = 0x2000, scoped, tag = 'input window, operand 2']
    #allocation8 [shape = 'u8[1024]{0}', space=vmem, size = 0x400, scoped, tag = 'output window, operand 0']
    %8 = vsyncpa [#allocation3], 0
    %s9 = scalar_lea.sflag [#allocation3], 1
    %10 = vsyncpa %s9, 0
    %11 = vsyncpa [#allocation6], 0
    %s12 = scalar_lea.sflag [#allocation6], 1
    %13 = vsyncpa %s12, 0
    %14 = vsyncpa [#allocation4], 0
    %s15 = scalar_lea.sflag [#allocation4], 1
    %16 = vsyncpa %s15, 0
    loop: start=0, step=1, limit=4
    $region2: #{tpu_custom_call.1} parent=1 // loop_pre_header
      _
    $region3: #{tpu_custom_call.1} parent=1 // loop_header
      %s18 = sphi 0, %s22
      %p19 = scmp.ge.s32.totalorder %s18, 4
      %s25 = sphi 0, %s37
      %s26 = sphi 0, %s33
      %s27 = sphi 0, %s25
      %s28 = sphi 0, %s26
      %s29 = sphi 0, %s27
      %s30 = sphi 0, %s28
      %s42 = sphi 0, %s44
      %s45 = sphi 0, %s42
      %s46 = sphi 0, %s45
      %s62 = sphi 0, %s46
      %s70 = sphi 0, %s72
      %s73 = sphi 0, %s70
      %s74 = sphi 0, %s73
      %s90 = sphi 0, %s74
      %s98 = sphi 0, %s100
      %s101 = sphi 0, %s98
      %s102 = sphi 0, %s101
      %s118 = sphi 0, %s102
      %s126 = sphi 0, %s128
      %s129 = sphi 0, %s126
      %s130 = sphi 0, %s129
      %s146 = sphi 0, %s130
    $region4: #{tpu_custom_call.1} parent=1 // loop_header_branch
      %21 = sbr.rel (%p19) target = $region8
    $region5: #{tpu_custom_call.1} parent=1 // loop_body
      %s23 = ssub.s32 %s18, 1
      %s24 = ssub.s32 %s18, 2
      %s31 = sadd.s32 1, %s26
      %p32 = scmp.ge.s32.totalorder %s31, 1
      %s33 = scalar_select %p32, 0, %s31
      %s34 = sadd.s32 1, %s25
      %s35 = scalar_select %p32, %s34, %s25
      %p36 = scmp.ge.s32.totalorder %s35, 2
      %s37 = scalar_select %p36, 0, %s35
      %s38 = ssub.s32 %s25, %s37
      %s39 = ssub.s32 %s26, %s33
      %s40 = sor.u32 %s38, %s39
      %p41 = scmp.eq.s32.totalorder %s40, 0
      %s43 = sadd.s32 %s42, 1
      %s44 = scalar_select %p41, %s42, %s43
      %p47 = pneg %p41
      %p48 = scmp.eq.s32.totalorder %s18, 1
      %p49 = por %p47, %p48
      %p50 = scmp.ne.s32.totalorder %s42, %s45
      %p51 = scmp.eq.s32.totalorder %s18, 0
      %p52 = por %p50, %p51
      %p53 = scmp.ne.s32.totalorder %s42, %s45
      %p54 = scmp.eq.s32.totalorder %s23, 1
      %p55 = por %p53, %p54
      %p56 = scmp.ne.s32.totalorder %s45, %s46
      %p57 = scmp.eq.s32.totalorder %s23, 0
      %p58 = por %p56, %p57
      %p59 = scmp.ne.s32.totalorder %s45, %s46
      %p60 = scmp.eq.s32.totalorder %s24, 1
      %p61 = por %p59, %p60
      %p63 = scmp.ne.s32.totalorder %s46, %s62
      %p64 = scmp.eq.s32.totalorder %s24, 0
      %p65 = por %p63, %p64
      %s66 = ssub.s32 %s25, %s37
      %s67 = ssub.s32 %s26, %s33
      %s68 = sor.u32 %s66, %s67
      %p69 = scmp.eq.s32.totalorder %s68, 0
      %s71 = sadd.s32 %s70, 1
      %s72 = scalar_select %p69, %s70, %s71
      %p75 = pneg %p69
      %p76 = scmp.eq.s32.totalorder %s18, 1
      %p77 = por %p75, %p76
      %p78 = scmp.ne.s32.totalorder %s70, %s73
      %p79 = scmp.eq.s32.totalorder %s18, 0
      %p80 = por %p78, %p79
      %p81 = scmp.ne.s32.totalorder %s70, %s73
      %p82 = scmp.eq.s32.totalorder %s23, 1
      %p83 = por %p81, %p82
      %p84 = scmp.ne.s32.totalorder %s73, %s74
      %p85 = scmp.eq.s32.totalorder %s23, 0
      %p86 = por %p84, %p85
      %p87 = scmp.ne.s32.totalorder %s73, %s74
      %p88 = scmp.eq.s32.totalorder %s24, 1
      %p89 = por %p87, %p88
      %p91 = scmp.ne.s32.totalorder %s74, %s90
      %p92 = scmp.eq.s32.totalorder %s24, 0
      %p93 = por %p91, %p92
      %s94 = ssub.s32 %s25, %s37
      %s95 = ssub.s32 %s26, %s33
      %s96 = sor.u32 %s94, %s95
      %p97 = scmp.eq.s32.totalorder %s96, 0
      %s99 = sadd.s32 %s98, 1
      %s100 = scalar_select %p97, %s98, %s99
      %p103 = pneg %p97
      %p104 = scmp.eq.s32.totalorder %s18, 1
      %p105 = por %p103, %p104
      %p106 = scmp.ne.s32.totalorder %s98, %s101
      %p107 = scmp.eq.s32.totalorder %s18, 0
      %p108 = por %p106, %p107
      %p109 = scmp.ne.s32.totalorder %s98, %s101
      %p110 = scmp.eq.s32.totalorder %s23, 1
      %p111 = por %p109, %p110
      %p112 = scmp.ne.s32.totalorder %s101, %s102
      %p113 = scmp.eq.s32.totalorder %s23, 0
      %p114 = por %p112, %p113
      %p115 = scmp.ne.s32.totalorder %s101, %s102
      %p116 = scmp.eq.s32.totalorder %s24, 1
      %p117 = por %p115, %p116
      %p119 = scmp.ne.s32.totalorder %s102, %s118
      %p120 = scmp.eq.s32.totalorder %s24, 0
      %p121 = por %p119, %p120
      %s122 = sadd.s32 %s25, %s26
      %s123 = sadd.s32 %s37, %s33
      %s124 = ssub.s32 %s122, %s123
      %p125 = scmp.eq.s32.totalorder %s124, 0
      %s127 = sadd.s32 %s126, 1
      %s128 = scalar_select %p125, %s126, %s127
      %p131 = pneg %p125
      %p132 = scmp.eq.s32.totalorder %s18, 1
      %p133 = por %p131, %p132
      %p134 = scmp.ne.s32.totalorder %s126, %s129
      %p135 = scmp.eq.s32.totalorder %s18, 0
      %p136 = por %p134, %p135
      %p137 = scmp.ne.s32.totalorder %s126, %s129
      %p138 = scmp.eq.s32.totalorder %s23, 1
      %p139 = por %p137, %p138
      %p140 = scmp.ne.s32.totalorder %s129, %s130
      %p141 = scmp.eq.s32.totalorder %s23, 0
      %p142 = por %p140, %p141
      %p143 = scmp.ne.s32.totalorder %s129, %s130
      %p144 = scmp.eq.s32.totalorder %s24, 1
      %p145 = por %p143, %p144
      %p147 = scmp.ne.s32.totalorder %s130, %s146
      %p148 = scmp.eq.s32.totalorder %s24, 0
      %p149 = por %p147, %p148
      %p150 = scmp.le.s32.totalorder 1, %s18
      %p151 = scmp.lt.s32.totalorder %s18, 3
      %p152 = pnand %p150, %p151
      %p153 = pneg %p152
      // Predicated region
      $region9: #{tpu_custom_call.1} parent=5 // pred_check
        _
      $region10: #{tpu_custom_call.1} parent=5 // pred_check_branch
        %155 = sbr.rel (%p152) target = $region12
      $region11: #{tpu_custom_call.1} parent=5 // pred_region
        %s156 = ssub.s32 %s18, 1
      $region12: #{tpu_custom_call.1} parent=5 // pred_fallthru
        _
      %p157 = scmp.lt.s32.totalorder %s18, 2
      // Predicated region
      $region13: #{tpu_custom_call.1} parent=5 // pred_check
        %p158 = pneg %p157
      $region14: #{tpu_custom_call.1} parent=5 // pred_check_branch
        %160 = sbr.rel (%p158) target = $region16
      $region15: #{tpu_custom_call.1} parent=5 // pred_region
        // Predicated region
        $region17: #{tpu_custom_call.1} parent=15 // pred_check
          %p161 = pneg %p52
        $region18: #{tpu_custom_call.1} parent=15 // pred_check_branch
          %163 = sbr.rel (%p161) target = $region20
        $region19: #{tpu_custom_call.1} parent=15 // pred_region
          %s164 = sand.u32 %s42, 1
          %s165 = scalar_lea.sflag [#allocation3], %s164
          %s166 = sand.u32 %s42, 1
          %s167 = smul.addr %s166, 2
          %s168 = scalar_lea.vmem [#allocation2], %s167
          %s169 = smul.u32 2, %s26
          %s171 = ssub.s32 32, 32
          %172 = vsyncadd %s165, %s171
          %s173 = smul.addr %s25, 2
          %s174 = sadd.s32 %s169, %s173
          %s175 = smul.addr %s174, 16
          %s176 = scalar_lea.hbm %s0, %s175
          %s178 = sshll.u32 %s168, 4
          %s179 = int_to_ptr.vmem [resolvable:$true] %s178
          %181 = dma.hbm_to_vmem [thread:$0]  %s176, 32, %s179, %s165
        $region20: #{tpu_custom_call.1} parent=15 // pred_fallthru
          _
        // Predicated region
        $region21: #{tpu_custom_call.1} parent=15 // pred_check
          %p182 = pneg %p80
        $region22: #{tpu_custom_call.1} parent=15 // pred_check_branch
          %184 = sbr.rel (%p182) target = $region24
        $region23: #{tpu_custom_call.1} parent=15 // pred_region
          %s185 = sand.u32 %s18, 1
          %s186 = scalar_lea.sflag [#allocation6], %s185
          %s187 = sand.u32 %s70, 1
          %s188 = smul.addr %s187, 8
          %s189 = scalar_lea.vmem [#allocation5], %s188
          %s190 = smul.u32 2, %s26
          %s192 = ssub.s32 128, 128
          %193 = vsyncadd %s186, %s192
          %s194 = smul.addr %s25, 2
          %s195 = sadd.s32 %s190, %s194
          %s196 = smul.addr %s195, 64
          %s197 = scalar_lea.hbm %s1, %s196
          %s199 = sshll.u32 %s189, 4
          %s200 = int_to_ptr.vmem [resolvable:$true] %s199
          %202 = dma.hbm_to_vmem [thread:$0]  %s197, 128, %s200, %s186
        $region24: #{tpu_custom_call.1} parent=15 // pred_fallthru
          _
        // Predicated region
        $region25: #{tpu_custom_call.1} parent=15 // pred_check
          %p203 = pneg %p108
        $region26: #{tpu_custom_call.1} parent=15 // pred_check_branch
          %205 = sbr.rel (%p203) target = $region28
        $region27: #{tpu_custom_call.1} parent=15 // pred_region
          %s206 = sand.u32 %s18, 1
          %s207 = scalar_lea.sflag [#allocation6], %s206
          %s208 = sand.u32 %s98, 1
          %s209 = smul.addr %s208, 8
          %s210 = scalar_lea.vmem [#allocation7], %s209
          %s211 = smul.u32 2, %s26
          %s213 = ssub.s32 128, 128
          %214 = vsyncadd %s207, %s213
          %s215 = smul.addr %s25, 2
          %s216 = sadd.s32 %s211, %s215
          %s217 = smul.addr %s216, 64
          %s218 = scalar_lea.hbm %s2, %s217
          %s220 = sshll.u32 %s210, 4
          %s221 = int_to_ptr.vmem [resolvable:$true] %s220
          %223 = dma.hbm_to_vmem [thread:$0]  %s218, 128, %s221, %s207
        $region28: #{tpu_custom_call.1} parent=15 // pred_fallthru
          _
      $region16: #{tpu_custom_call.1} parent=5 // pred_fallthru
        _
      %p224 = scmp.le.s32.totalorder 1, %s18
      %p225 = scmp.lt.s32.totalorder %s18, 3
      %p226 = pnand %p224, %p225
      %p227 = pneg %p226
      // Predicated region
      $region29: #{tpu_custom_call.1} parent=5 // pred_check
        _
      $region30: #{tpu_custom_call.1} parent=5 // pred_check_branch
        %229 = sbr.rel (%p226) target = $region32
      $region31: #{tpu_custom_call.1} parent=5 // pred_region
        %s230 = ssub.s32 %s18, 1
        %s231 = sand.u32 %s45, 1
        %s232 = scalar_lea.sflag [#allocation3], %s231
        %s233 = sand.u32 %s45, 1
        %s234 = smul.addr %s233, 2
        %s235 = scalar_lea.vmem [#allocation2], %s234
        // Predicated region
        $region33: #{tpu_custom_call.1} parent=31 // pred_check
          %p236 = pneg %p58
        $region34: #{tpu_custom_call.1} parent=31 // pred_check_branch
          %238 = sbr.rel (%p236) target = $region36
        $region35: #{tpu_custom_call.1} parent=31 // pred_region
          %239 = dma.done %s232, 32
        $region36: #{tpu_custom_call.1} parent=31 // pred_fallthru
          _
        %s240 = sand.u32 %s23, 1
        %s241 = scalar_lea.sflag [#allocation6], %s240
        %s242 = sand.u32 %s73, 1
        %s243 = smul.addr %s242, 8
        %s244 = scalar_lea.vmem [#allocation5], %s243
        // Predicated region
        $region37: #{tpu_custom_call.1} parent=31 // pred_check
          %p245 = pneg %p86
        $region38: #{tpu_custom_call.1} parent=31 // pred_check_branch
          %247 = sbr.rel (%p245) target = $region40
        $region39: #{tpu_custom_call.1} parent=31 // pred_region
          %248 = dma.done %s241, 128
        $region40: #{tpu_custom_call.1} parent=31 // pred_fallthru
          _
        %s249 = sand.u32 %s23, 1
        %s250 = scalar_lea.sflag [#allocation6], %s249
        %s251 = sand.u32 %s101, 1
        %s252 = smul.addr %s251, 8
        %s253 = scalar_lea.vmem [#allocation7], %s252
        // Predicated region
        $region41: #{tpu_custom_call.1} parent=31 // pred_check
          %p254 = pneg %p114
        $region42: #{tpu_custom_call.1} parent=31 // pred_check_branch
          %256 = sbr.rel (%p254) target = $region44
        $region43: #{tpu_custom_call.1} parent=31 // pred_region
          %257 = dma.done %s250, 128
        $region44: #{tpu_custom_call.1} parent=31 // pred_fallthru
          _
        %s258 = sand.u32 %s45, 1
        %s259 = scalar_lea.sflag [#allocation3], %s258
        %s260 = sand.u32 %s45, 1
        %s261 = smul.addr %s260, 2
        %s262 = scalar_lea.vmem [#allocation2], %s261
        %p263 = pneg %p58
        %p264 = pneg %p55
        %s265 = sand.u32 %s23, 1
        %s266 = scalar_lea.sflag [#allocation6], %s265
        %s267 = sand.u32 %s73, 1
        %s268 = smul.addr %s267, 8
        %s269 = scalar_lea.vmem [#allocation5], %s268
        %p270 = pneg %p86
        %p271 = pneg %p83
        %s272 = sand.u32 %s23, 1
        %s273 = scalar_lea.sflag [#allocation6], %s272
        %s274 = sand.u32 %s101, 1
        %s275 = smul.addr %s274, 8
        %s276 = scalar_lea.vmem [#allocation7], %s275
        %p277 = pneg %p114
        %p278 = pneg %p111
        %p279 = pneg %p142
        %p280 = pneg %p139
        %s281 = sand.u32 %s129, 1
        %s282 = scalar_lea.sflag [#allocation4], %s281
        %s283 = sand.u32 %s129, 1
        %s284 = scalar_lea.vmem [#allocation8], %s283
        %s285 = smul.u32 2, %s28
        %s286 = smul.u32 2, %s28
        %s287 = smul.u32 2, %s28
        %s288 = sadd.s32 %s27, %s28
        %v289 = vld [vmem:[%s235] sm:$0x3]
        %vm290 = vcmp.ne.s32.totalorder %v289, 4294967196
        %v291 = vlaneseq
        %v292 = vand.u32 %v291, 127
        %vm293 = vcmp.eq.s32.totalorder %v292, 2
        %v294 = vsel %vm290, 1, 0
        %v295 = vcvt.s32.f32 %v294
        %v297 = vlaneseq
        %v298 = vshrl.u32 %v297, 7
        %v299 = vsub.s32 0, %v298
        %v300 = vrot.slane %v295, %v299
        %v301 = vlaneseq
        %v302 = vshrl.u32 %v301, 7
        %v303 = vsub.s32 1, %v302
        %v304 = vrot.slane %v295, %v303
        %vm307 = vcmask 1040384
        %v308 = vsel %vm307, %v300, 0.0
        %v309 = vsel %vm307, %v304, 0.0
        %v310 = vadd.f32 %v308, %v309
        %311 = vadd.xlane.f32.xlu0 %v310
        %v312 = vpop.xlane.xlu0 %311
        %v313 = vrot.slane %v312, 4
        %v314 = vadd.f32 %v312, %v313
        %v315 = vrot.slane %v314, 2
        %v316 = vadd.f32 %v314, %v315
        %v317 = vrot.slane %v316, 1
        %v318 = vadd.f32 %v316, %v317
        %s319 = vtos %v318
        %v320 = vstv %s319
        %v321 = vsel %vm293, %v320, 0.0
        %v322 = vld [vmem:[%s244] sm:$0xff]
        %v324 = vcombine.high %v322, %v322
        %vm326 = vcmask 1043456
        %v327 = vsel %vm326, %v322, -inf
        %v328 = vrot.slane %v327, 4
        %v329 = vmax.f32 %v327, %v328
        %v330 = vrot.slane %v329, 2
        %v331 = vmax.f32 %v329, %v330
        %v332 = vrot.slane %v331, 1
        %v333 = vmax.f32 %v331, %v332
        %v334 = vsel %vm326, %v324, -inf
        %v335 = vrot.slane %v334, 4
        %v336 = vmax.f32 %v334, %v335
        %v337 = vrot.slane %v336, 2
        %v338 = vmax.f32 %v336, %v337
        %v339 = vrot.slane %v338, 1
        %v340 = vmax.f32 %v338, %v339
        %v343 = vcombine.low %v333, %v340
        %v345 = vsub.f32 %v322, %v343
        %v346 = vmul.f32 %v345, 1.442695
        %v347 = vpow.pop %v346
        %v349 = vcombine.high %v347, %v347
        %v351 = vsel %vm326, %v347, 0.0
        %v352 = vrot.slane %v351, 4
        %v353 = vadd.f32 %v351, %v352
        %v354 = vrot.slane %v353, 2
        %v355 = vadd.f32 %v353, %v354
        %v356 = vrot.slane %v355, 1
        %v357 = vadd.f32 %v355, %v356
        %v358 = vsel %vm326, %v349, 0.0
        %v359 = vrot.slane %v358, 4
        %v360 = vadd.f32 %v358, %v359
        %v361 = vrot.slane %v360, 2
        %v362 = vadd.f32 %v360, %v361
        %v363 = vrot.slane %v362, 1
        %v364 = vadd.f32 %v362, %v363
        %v365 = vlog2.pop %v357
        %v366 = vmul.f32 %v365, 0.6931472
        %v367 = vlog2.pop %v364
        %v368 = vmul.f32 %v367, 0.6931472
        %v369 = vadd.f32 %v333, %v366
        %v370 = vadd.f32 %v340, %v368
        %v371 = vlaneseq
        %v372 = vshrl.u32 %v371, 7
        %v373 = vlaneseq
        %v374 = vshrl.u32 %v373, 7
        %v375 = vsub.s32 0, %v374
        %v376 = vrot.slane %v289, %v375
        %v377 = vlaneseq
        %v378 = vshrl.u32 %v377, 7
        %v379 = vsub.s32 1, %v378
        %v380 = vrot.slane %v289, %v379
        %vm381 = vcmp.eq.s32.totalorder %v372, %v376
        %vm382 = vcmp.eq.s32.totalorder %v372, %v380
        %v383 = vsel %vm381, %v322, 0.0
        %v384 = vsel %vm382, %v324, 0.0
        %v385 = vsel %vm326, %v383, 0.0
        %v386 = vrot.slane %v385, 4
        %v387 = vadd.f32 %v385, %v386
        %v388 = vrot.slane %v387, 2
        %v389 = vadd.f32 %v387, %v388
        %v390 = vrot.slane %v389, 1
        %v391 = vadd.f32 %v389, %v390
        %v392 = vsel %vm326, %v384, 0.0
        %v393 = vrot.slane %v392, 4
        %v394 = vadd.f32 %v392, %v393
        %v395 = vrot.slane %v394, 2
        %v396 = vadd.f32 %v394, %v395
        %v397 = vrot.slane %v396, 1
        %v398 = vadd.f32 %v396, %v397
        %v399 = vsub.f32 %v369, %v391
        %v400 = vsub.f32 %v370, %v398
        %v403 = vcombine.low %v399, %v400
        %v405 = vunpack.c.l.s4 1966171168
        %v406 = vunpack.c.0.s8 %v405
        %v407 = vlaneseq
        %v408 = vshrl.u32 %v407, 7
        %v409 = vsub.s32 %v406, %v408
        %v410 = vrot.slane %v403, %v409
        %v412 = vunpack.c.l.s4 1966171168
        %v413 = vunpack.c.0.s8 %v412
        %v414 = vlaneseq
        %v415 = vshrl.u32 %v414, 7
        %v416 = vsub.s32 %v413, %v415
        %v417 = vrot.slane %v410, %v416
        %v419 = vsel %vm290, %v417, 0.0
        %vm420 = vcmp.eq.s32.totalorder %v292, 0
        %v422 = vlaneseq
        %v423 = vshrl.u32 %v422, 7
        %v424 = vsub.s32 0, %v423
        %v425 = vrot.slane %v419, %v424
        %v426 = vlaneseq
        %v427 = vshrl.u32 %v426, 7
        %v428 = vsub.s32 1, %v427
        %v429 = vrot.slane %v419, %v428
        %v432 = vsel %vm307, %v425, 0.0
        %v433 = vsel %vm307, %v429, 0.0
        %v434 = vadd.f32 %v432, %v433
        %435 = vadd.xlane.f32.xlu0 %v434
        %v436 = vpop.xlane.xlu0 %435
        %v437 = vrot.slane %v436, 4
        %v438 = vadd.f32 %v436, %v437
        %v439 = vrot.slane %v438, 2
        %v440 = vadd.f32 %v438, %v439
        %v441 = vrot.slane %v440, 1
        %v442 = vadd.f32 %v440, %v441
        %s443 = vtos %v442
        %v444 = vstv %s443
        %v445 = vsel %vm420, %v444, %v321
        %v446 = vld [vmem:[%s253] sm:$0xff]
        %v448 = vcombine.high %v446, %v446
        %v450 = vsel %vm326, %v446, -inf
        %v451 = vrot.slane %v450, 4
        %v452 = vmax.f32 %v450, %v451
        %v453 = vrot.slane %v452, 2
        %v454 = vmax.f32 %v452, %v453
        %v455 = vrot.slane %v454, 1
        %v456 = vmax.f32 %v454, %v455
        %v457 = vsel %vm326, %v448, -inf
        %v458 = vrot.slane %v457, 4
        %v459 = vmax.f32 %v457, %v458
        %v460 = vrot.slane %v459, 2
        %v461 = vmax.f32 %v459, %v460
        %v462 = vrot.slane %v461, 1
        %v463 = vmax.f32 %v461, %v462
        %v466 = vcombine.low %v456, %v463
        %v468 = vsub.f32 %v446, %v466
        %v469 = vmul.f32 %v468, 1.442695
        %v470 = vpow.pop %v469
        %v472 = vcombine.high %v470, %v470
        %v474 = vsel %vm326, %v470, 0.0
        %v475 = vrot.slane %v474, 4
        %v476 = vadd.f32 %v474, %v475
        %v477 = vrot.slane %v476, 2
        %v478 = vadd.f32 %v476, %v477
        %v479 = vrot.slane %v478, 1
        %v480 = vadd.f32 %v478, %v479
        %v481 = vsel %vm326, %v472, 0.0
        %v482 = vrot.slane %v481, 4
        %v483 = vadd.f32 %v481, %v482
        %v484 = vrot.slane %v483, 2
        %v485 = vadd.f32 %v483, %v484
        %v486 = vrot.slane %v485, 1
        %v487 = vadd.f32 %v485, %v486
        %v488 = vlog2.pop %v480
        %v489 = vmul.f32 %v488, 0.6931472
        %v490 = vlog2.pop %v487
        %v491 = vmul.f32 %v490, 0.6931472
        %v492 = vadd.f32 %v456, %v489
        %v493 = vadd.f32 %v463, %v491
        %v494 = vsel %vm381, %v446, 0.0
        %v495 = vsel %vm382, %v448, 0.0
        %v496 = vsel %vm326, %v494, 0.0
        %v497 = vrot.slane %v496, 4
        %v498 = vadd.f32 %v496, %v497
        %v499 = vrot.slane %v498, 2
        %v500 = vadd.f32 %v498, %v499
        %v501 = vrot.slane %v500, 1
        %v502 = vadd.f32 %v500, %v501
        %v503 = vsel %vm326, %v495, 0.0
        %v504 = vrot.slane %v503, 4
        %v505 = vadd.f32 %v503, %v504
        %v506 = vrot.slane %v505, 2
        %v507 = vadd.f32 %v505, %v506
        %v508 = vrot.slane %v507, 1
        %v509 = vadd.f32 %v507, %v508
        %v510 = vsub.f32 %v492, %v502
        %v511 = vsub.f32 %v493, %v509
        %v514 = vcombine.low %v510, %v511
        %v516 = vunpack.c.l.s4 1966171168
        %v517 = vunpack.c.0.s8 %v516
        %v518 = vlaneseq
        %v519 = vshrl.u32 %v518, 7
        %v520 = vsub.s32 %v517, %v519
        %v521 = vrot.slane %v514, %v520
        %v523 = vunpack.c.l.s4 1966171168
        %v524 = vunpack.c.0.s8 %v523
        %v525 = vlaneseq
        %v526 = vshrl.u32 %v525, 7
        %v527 = vsub.s32 %v524, %v526
        %v528 = vrot.slane %v521, %v527
        %v530 = vsel %vm290, %v528, 0.0
        %vm531 = vcmp.eq.s32.totalorder %v292, 1
        %v533 = vlaneseq
        %v534 = vshrl.u32 %v533, 7
        %v535 = vsub.s32 0, %v534
        %v536 = vrot.slane %v530, %v535
        %v537 = vlaneseq
        %v538 = vshrl.u32 %v537, 7
        %v539 = vsub.s32 1, %v538
        %v540 = vrot.slane %v530, %v539
        %v543 = vsel %vm307, %v536, 0.0
        %v544 = vsel %vm307, %v540, 0.0
        %v545 = vadd.f32 %v543, %v544
        %546 = vadd.xlane.f32.xlu0 %v545
        %v547 = vpop.xlane.xlu0 %546
        %v548 = vrot.slane %v547, 4
        %v549 = vadd.f32 %v547, %v548
        %v550 = vrot.slane %v549, 2
        %v551 = vadd.f32 %v549, %v550
        %v552 = vrot.slane %v551, 1
        %v553 = vadd.f32 %v551, %v552
        %s554 = vtos %v553
        %v555 = vstv %s554
        %v556 = vsel %vm531, %v555, %v445
        %557 = vst [vmem:[%s284] sm:$0x1] %v556
        %s558 = sand.u32 %s129, 1
        %s559 = scalar_lea.sflag [#allocation4], %s558
        %s560 = sand.u32 %s129, 1
        %s561 = scalar_lea.vmem [#allocation8], %s560
        // Predicated region
        $region45: #{tpu_custom_call.1} parent=31 // pred_check
          %p562 = pneg %p139
        $region46: #{tpu_custom_call.1} parent=31 // pred_check_branch
          %564 = sbr.rel (%p562) target = $region48
        $region47: #{tpu_custom_call.1} parent=31 // pred_region
          %s565 = sadd.s32 %s27, %s28
          %s567 = ssub.s32 16, 16
          %568 = vsyncadd %s559, %s567
          %s569 = smul.addr %s565, 16
          %s570 = scalar_lea.hbm %s3, %s569
          %s572 = sshll.u32 %s561, 4
          %s573 = int_to_ptr.vmem [resolvable:$true] %s572
          %575 = dma.vmem_to_hbm [thread:$0]  %s573, 16, %s570, %s559
        $region48: #{tpu_custom_call.1} parent=31 // pred_fallthru
          _
      $region32: #{tpu_custom_call.1} parent=5 // pred_fallthru
        _
      %p576 = scmp.le.s32.totalorder 2, %s18
      // Predicated region
      $region49: #{tpu_custom_call.1} parent=5 // pred_check
        %p577 = pneg %p576
      $region50: #{tpu_custom_call.1} parent=5 // pred_check_branch
        %579 = sbr.rel (%p577) target = $region52
      $region51: #{tpu_custom_call.1} parent=5 // pred_region
        %s580 = ssub.s32 %s18, 2
        // Predicated region
        $region53: #{tpu_custom_call.1} parent=51 // pred_check
          %p581 = pneg %p145
        $region54: #{tpu_custom_call.1} parent=51 // pred_check_branch
          %583 = sbr.rel (%p581) target = $region56
        $region55: #{tpu_custom_call.1} parent=51 // pred_region
          %s584 = sand.u32 %s130, 1
          %s585 = scalar_lea.sflag [#allocation4], %s584
          %s586 = sand.u32 %s130, 1
          %s587 = scalar_lea.vmem [#allocation8], %s586
          %588 = dma.done %s585, 16
        $region56: #{tpu_custom_call.1} parent=51 // pred_fallthru
          _
      $region52: #{tpu_custom_call.1} parent=5 // pred_fallthru
        _
    $region6: #{tpu_custom_call.1} parent=1 // loop_footer
      %s22 = sadd.s32 1, %s18
    $region7: #{tpu_custom_call.1} parent=1 // loop_footer_branch
      %17 = sbr.rel target = $region3
    $region8: #{tpu_custom_call.1} parent=1 // loop_exit
      _
    %589 = vsyncpa [#allocation3], 1
    %s590 = scalar_lea.sflag [#allocation3], 1
    %591 = vsyncpa %s590, 1
    %592 = vsyncpa [#allocation6], 1
    %s593 = scalar_lea.sflag [#allocation6], 1
    %594 = vsyncpa %s593, 1
    %595 = vsyncpa [#allocation4], 1
    %s596 = scalar_lea.sflag [#allocation4], 1
    %597 = vsyncpa %s596, 1

</llo_original>
